<compile_context>
chip_gen: v5e
topology: v5e:2x2
jax: 0.10.0
libtpu: 0.0.40
codegen_flags: <defaults>
</compile_context>

<pallas_src>
import functools

import numpy as np
import jax
import jax.numpy as jnp
from jax.experimental import pallas as pl
from jax.experimental.pallas import tpu as pltpu


def make_position_encoding_table(d_model: int, max_seq_len: int) -> jnp.ndarray:
    """Deterministic sinusoidal table, identical math to the torch __init__.

    Row 0 is the all-zero padding row; row p (1..max_seq_len) encodes position p.
    """
    j = np.arange(d_model)
    pos = np.arange(max_seq_len)
    pe = pos[:, None] / np.power(10000.0, 2.0 * (j // 2) / d_model)
    pe[:, 0::2] = np.sin(pe[:, 0::2])
    pe[:, 1::2] = np.cos(pe[:, 1::2])
    pad_row = np.zeros((1, d_model), dtype=np.float64)
    table = np.concatenate([pad_row, pe], axis=0)  # (max_seq_len + 1, d_model)
    return jnp.asarray(table, dtype=jnp.float32)


def _round_up(x: int, m: int) -> int:
    return ((x + m - 1) // m) * m


def _pe_kernel(lens_ref, enc_ref, out_ref, *, d_model: int, f_tile: int):
    # lens_ref: VMEM (TB, 1) int32  — sequence lengths for this batch block
    # enc_ref : VMEM (1, F_TILE)    — chunk of the flattened table rows 1..max_len
    # out_ref : VMEM (TB, F_TILE)   — chunk of flattened (max_len*d_model) rows
    #
    # Flat-mask trick: out[b, t, j] is kept iff t < len[b]; in row-major flat
    # index k = t*d_model + j that is exactly k < len[b]*d_model, so one
    # lane-dense vectorized compare/select covers the whole block. Compute is
    # free filler under the HBM-store roofline.
    f = pl.program_id(1)
    k = f * f_tile + jax.lax.broadcasted_iota(jnp.int32, out_ref.shape, 1)  # (TB, F_TILE)
    limit = lens_ref[...] * d_model                                          # (TB, 1)
    out_ref[...] = jnp.where(k < limit, enc_ref[...], 0.0).astype(out_ref.dtype)


def positional_encoding_forward(table: jnp.ndarray,
                                input_len: jnp.ndarray,
                                *,
                                max_len: int | None = None,
                                out_dtype=jnp.float32) -> jnp.ndarray:
    """input_len: (B, 1) integer lengths.  Returns (B, max_len, d_model).

    max_len is STATIC (defaults to max_seq_len); positions >= len[b] are
    zero-padded (pad-row semantics). Requires all lengths <= max_len.
    """
    lens = jnp.reshape(input_len, (-1,)).astype(jnp.int32)      # (B,)
    B = int(lens.shape[0])
    n_rows, d_model = table.shape
    max_seq_len = n_rows - 1
    if max_len is None:
        max_len = max_seq_len
    max_len = int(max_len)
    assert 1 <= max_len <= max_seq_len
    F = max_len * d_model
    assert F < 2 ** 31, "int32 flat-index mask would overflow"

    elt_out = jnp.dtype(out_dtype).itemsize
    TARGET_BLOCK_BYTES = 4 << 20            # ~4 MiB output blocks (2-8 MiB sweet spot)
    F128 = _round_up(F, 128)                # lane-dense flattened row width
    row_bytes = F128 * elt_out

    if row_bytes * 8 >= TARGET_BLOCK_BYTES:
        # Flattened row alone is large: keep TB = 8 and tile the feature axis.
        TB = 8
        F_TILE = min(F128, max(128, (TARGET_BLOCK_BYTES // (TB * elt_out)) // 128 * 128))
        F_final = _round_up(F, F_TILE)
    else:
        # Small/medium rows: single feature tile, grow the batch block instead.
        F_TILE = F128
        F_final = F128
        TB = max(8, min((TARGET_BLOCK_BYTES // row_bytes // 8) * 8, _round_up(B, 8)))

    n_b = pl.cdiv(B, TB)
    n_f = F_final // F_TILE
    B_pad = n_b * TB

    # Pad only the tiny lengths array (padded rows -> length 0 -> zero rows,
    # dropped by Pallas' ragged-last-block output masking; no [:B] slice).
    lens_col = jnp.zeros((B_pad, 1), jnp.int32).at[:B, 0].set(lens)

    # Host-side slice of exactly the needed encoding rows, flattened (and
    # zero-padded to F_final so every store is an unmasked lane-dense vst).
    enc_flat = jnp.reshape(table[1:max_len + 1, :], (1, F)).astype(jnp.float32)
    if F_final != F:
        enc_flat = jnp.pad(enc_flat, ((0, 0), (0, F_final - F)))

    # Double-buffered resident blocks + margin; raise scoped VMEM only when
    # needed (v5e default 16 MiB -> trigger at 12 MiB), cap at 48 MiB for v7x.
    need_bytes = 2 * TB * F_TILE * elt_out + 2 * F_TILE * 4 + 2 * TB * 4 + (2 << 20)
    vmem_limit = None if need_bytes <= (12 << 20) else min(need_bytes, 48 << 20)

    out_flat = pl.pallas_call(
        functools.partial(_pe_kernel, d_model=d_model, f_tile=F_TILE),
        out_shape=jax.ShapeDtypeStruct((B, F_final), out_dtype),
        grid=(n_b, n_f),
        in_specs=[
            pl.BlockSpec((TB, 1), lambda i, f: (i, 0)),       # lengths per batch block
            pl.BlockSpec((1, F_TILE), lambda i, f: (0, f)),   # table chunk per f step
        ],
        out_specs=pl.BlockSpec((TB, F_TILE), lambda i, f: (i, f)),
        compiler_params=pltpu.CompilerParams(
            dimension_semantics=("parallel", "parallel"),     # both TCs split the grid
            vmem_limit_bytes=vmem_limit,
        ),
    )(lens_col, enc_flat)

    if F_final != F:
        out_flat = out_flat[:, :F]   # only when max_len*d_model isn't 128-aligned
    return jnp.reshape(out_flat, (B, max_len, d_model))


def _reference_forward(table: np.ndarray, lens: np.ndarray, max_len: int) -> np.ndarray:
    B = lens.shape[0]
    d_model = table.shape[1]
    out = np.zeros((B, max_len, d_model), dtype=np.float32)
    for i, L in enumerate(lens):
        L = int(L)
        idx = list(range(1, L + 1)) + [0] * (max_len - L)
        out[i] = table[np.asarray(idx, dtype=np.int64)]
    return out


if __name__ == "__main__":
    d_model = 32
    max_seq_len = 16
    batch = 2

    table = make_position_encoding_table(d_model, max_seq_len)

    # Deterministic example input lengths, shape [B, 1] like the torch forward.
    key = jax.random.PRNGKey(0)
    input_len = jax.random.randint(key, (batch, 1), minval=1, maxval=max_seq_len + 1,
                                   dtype=jnp.int32)

    out = positional_encoding_forward(table, input_len)   # static max_len = max_seq_len
    out = jax.block_until_ready(out)

    # Correctness check vs. pure numpy reference of the torch semantics
    # (evaluated at the same static max_len).
    lens_np = np.asarray(jax.device_get(input_len)).reshape(-1)
    ref = _reference_forward(np.asarray(jax.device_get(table)), lens_np, max_seq_len)
    np.testing.assert_allclose(np.asarray(jax.device_get(out)), ref, rtol=1e-6, atol=1e-6)

    print("KERNEL_OK")
</pallas_src>

<mosaic_0001>
module attributes {stable_mosaic.version = 11 : i64} {
  func.func @_pe_kernel(%arg0: i32, %arg1: i32, %arg2: memref<8x1xi32, #tpu.memory_space<vmem>>, %arg3: memref<1x512xf32, #tpu.memory_space<vmem>>, %arg4: memref<8x512xf32, #tpu.memory_space<vmem>>) attributes {dimension_semantics = [#tpu.dimension_semantics<parallel>, #tpu.dimension_semantics<parallel>], iteration_bounds = array<i64: 1, 1>, scalar_prefetch = 0 : i64, scratch_operands = 0 : i64, tpu.core_type = #tpu.core_type<tc>, window_params = [{transform_indices = @transform_0, window_bounds = array<i64: 8, 1>}, {transform_indices = @transform_1, window_bounds = array<i64: 1, 512>}, {transform_indices = @transform_2, window_bounds = array<i64: 8, 512>}]} {
    %c512_i32 = arith.constant 512 : i32
    %0 = arith.muli %arg1, %c512_i32 : i32
    %1 = tpu.iota {dimensions = array<i32: 1>} : vector<8x512xi32>
    %2 = vector.broadcast %0 : i32 to vector<8x512xi32>
    %3 = arith.addi %2, %1 : vector<8x512xi32>
    %c0 = arith.constant 0 : index
    %c0_0 = arith.constant 0 : index
    %4 = vector.load %arg2[%c0, %c0_0] : memref<8x1xi32, #tpu.memory_space<vmem>>, vector<8x1xi32>
    %c32_i32 = arith.constant 32 : i32
    %5 = vector.broadcast %c32_i32 : i32 to vector<8x1xi32>
    %6 = arith.muli %4, %5 : vector<8x1xi32>
    %7 = vector.broadcast %6 : vector<8x1xi32> to vector<8x512xi32>
    %8 = arith.cmpi slt, %3, %7 : vector<8x512xi32>
    %c0_1 = arith.constant 0 : index
    %c0_2 = arith.constant 0 : index
    %9 = vector.load %arg3[%c0_1, %c0_2] : memref<1x512xf32, #tpu.memory_space<vmem>>, vector<1x512xf32>
    %cst = arith.constant 0.000000e+00 : f32
    %10 = vector.shape_cast %9 : vector<1x512xf32> to vector<1x512xf32>
    %11 = vector.broadcast %10 : vector<1x512xf32> to vector<8x512xf32>
    %12 = vector.broadcast %cst : f32 to vector<8x512xf32>
    %13 = arith.select %8, %11, %12 : vector<8x512xi1>, vector<8x512xf32>
    %c0_3 = arith.constant 0 : index
    %c0_4 = arith.constant 0 : index
    %14 = vector.load %arg4[%c0_3, %c0_4] : memref<8x512xf32, #tpu.memory_space<vmem>>, vector<8x512xf32>
    tpu.vector_store %arg4[%c0_3, %c0_4], %13 {strides = array<i32>} : memref<8x512xf32, #tpu.memory_space<vmem>>, vector<8x512xf32>,
    return
  }
  func.func @transform_0(%arg0: i32, %arg1: i32) -> (i32, i32) {
    %c0_i32 = arith.constant 0 : i32
    %c0_i32_0 = arith.constant 0 : i32
    return %arg0, %c0_i32 : i32, i32
  }
  func.func @transform_1(%arg0: i32, %arg1: i32) -> (i32, i32) {
    %c0_i32 = arith.constant 0 : i32
    %c0_i32_0 = arith.constant 0 : i32
    return %c0_i32, %arg1 : i32, i32
  }
  func.func @transform_2(%arg0: i32, %arg1: i32) -> (i32, i32) {
    %c0_i32 = arith.constant 0 : i32
    return %arg0, %arg1 : i32, i32
  }
}

</mosaic_0001>

<llo_original>
// kernel: tpu_custom_call.1
$region0: #{tpu_custom_call.1}
  #allocation0 [shape = 'u32[]', space=smem, size = 0x4, offset = 0x4, fixed_abs, tag = 'smem constant byte address 0x4 - core index']
  #allocation1 [shape = 'u32[72,128]{1,0:T(1,128)}', space=vmem, size = 0x9000, scoped, tag = 'internal scratch']
  %s0 = inlined_call_operand.vmem [shape: s32[8,1], index: 0, kind: input, shape index: {}]
  %s1 = inlined_call_operand.vmem [shape: f32[1,512], index: 1, kind: input, shape index: {}]
  %s2 = inlined_call_operand.hbm [shape: f32[2,512], index: 2, kind: output, shape index: {}]
  %s3 = sld [smem:[#allocation0]]
  $region18: #{tpu_custom_call.1} parent=0
    _
  %s5 = ssub.s32 1, %s3
  %s6 = scalar_select 0, %s5, %s3
  $region1: #{tpu_custom_call.1} parent=0
    #allocation2 [shape = 'u8[16384]{0}', space=vmem, size = 0x4000, scoped, tag = 'output window, operand 0, single buffered']
    #allocation3 [shape = 's32[1]{0}', space=sflag, size = 0x4, scoped, tag = 'scoped memory for tpu_custom_call.1']
    %7 = vsyncpa [#allocation3], 0
    // Predicated region
    $region2: #{tpu_custom_call.1} parent=1 // pred_check
      _
    $region3: #{tpu_custom_call.1} parent=1 // pred_check_branch
      %9 = sbr.rel (0) target = $region5
    $region4: #{tpu_custom_call.1} parent=1 // pred_region
      _
    $region5: #{tpu_custom_call.1} parent=1 // pred_fallthru
      _
    // Predicated region
    $region6: #{tpu_custom_call.1} parent=1 // pred_check
      _
    $region7: #{tpu_custom_call.1} parent=1 // pred_check_branch
      %11 = sbr.rel (0) target = $region9
    $region8: #{tpu_custom_call.1} parent=1 // pred_region
      _
    $region9: #{tpu_custom_call.1} parent=1 // pred_fallthru
      _
    %s12 = smul.u32 0, 512
    %v13 = vlaneseq
    %v14 = vand.u32 %v13, 127
    %v15 = vadd.s32 %v14, 128
    %v16 = vadd.s32 %v14, 256
    %v17 = vadd.s32 %v14, 384
    %v18 = vstv %s12
    %v19 = vadd.s32 %v18, %v14
    %v20 = vadd.s32 %v18, %v15
    %v21 = vadd.s32 %v18, %v16
    %v22 = vadd.s32 %v18, %v17
    %v23 = vld [vmem:[%s0] sm:$0xff]
    %v24 = vmul.u32 %v23, 32
    %25 = vset.pattern.permute.xlu0 0
    %26 = vperm.xlu0 %25, %v24
    %v27 = vpop.permute.xlu0 %26
    %vm28 = vcmp.lt.s32.totalorder %v19, %v27
    %vm29 = vcmp.lt.s32.totalorder %v20, %v27
    %vm30 = vcmp.lt.s32.totalorder %v21, %v27
    %vm31 = vcmp.lt.s32.totalorder %v22, %v27
    %v32 = vld [vmem:[%s1] sm:$0xf]
    %v34 = vperm.slane %v32, 0
    %v35 = vperm.slane %v32, 1
    %v36 = vperm.slane %v32, 2
    %v37 = vperm.slane %v32, 3
    %v42 = vsel %vm28, %v34, 0.0
    %v43 = vsel %vm29, %v35, 0.0
    %v44 = vsel %vm30, %v36, 0.0
    %v45 = vsel %vm31, %v37, 0.0
    %v50 = vrot.slane %v43, 6
    %v51 = vrot.slane %v44, 4
    %v52 = vrot.slane %v45, 2
    %vm53 = vcmask 1041408
    %v54 = vsel %vm53, %v42, %v50
    %vm55 = vcmask 1045508
    %v56 = vsel %vm55, %v51, %v52
    %vm57 = vcmask 1043456
    %v58 = vsel %vm57, %v54, %v56
    %vm59 = vcmask 1043458
    %v60 = vsel %vm59, %v42, %v50
    %vm61 = vcmask 1045504
    %v62 = vsel %vm61, %v52, %v51
    %vm63 = vcmask 1045506
    %v64 = vsel %vm63, %v60, %v62
    %v65 = vrot.slane %v64, 2
    %v66 = vsel %vm55, %v42, %v50
    %v67 = vsel %vm53, %v51, %v52
    %v68 = vsel %vm57, %v67, %v66
    %v69 = vrot.slane %v68, 4
    %v70 = vsel %vm61, %v50, %v42
    %v71 = vsel %vm59, %v51, %v52
    %v72 = vsel %vm63, %v71, %v70
    %v73 = vrot.slane %v72, 6
    %78 = vst [vmem:[#allocation2] sm:$0xff] %v58
    %79 = vst [vmem:[#allocation2 + $0x8] sm:$0xff] %v65
    %80 = vst [vmem:[#allocation2 + $0x10] sm:$0xff] %v69
    %81 = vst [vmem:[#allocation2 + $0x18] sm:$0xff] %v73
    // Predicated region
    $region10: #{tpu_custom_call.1} parent=1 // pred_check
      _
    $region11: #{tpu_custom_call.1} parent=1 // pred_check_branch
      %83 = sbr.rel (0) target = $region13
    $region12: #{tpu_custom_call.1} parent=1 // pred_region
      %85 = vsyncadd [#allocation3], 384
      %s86 = sshll.u32 [#allocation2], 4
      %s87 = int_to_ptr.vmem [resolvable:$true] %s86
      %s88 = sshll.u32 %s2, 4
      %s89 = int_to_ptr.hbm [resolvable:$true] %s88
      %94 = dma.vmem_to_hbm [thread:$0]  %s87, 128, %s89, [#allocation3], 128, 128, 8
    $region13: #{tpu_custom_call.1} parent=1 // pred_fallthru
      _
    // Predicated region
    $region14: #{tpu_custom_call.1} parent=1 // pred_check
      _
    $region15: #{tpu_custom_call.1} parent=1 // pred_check_branch
      %96 = sbr.rel (0) target = $region17
    $region16: #{tpu_custom_call.1} parent=1 // pred_region
      %98 = dma.done [#allocation3], 512
    $region17: #{tpu_custom_call.1} parent=1 // pred_fallthru
      _
    %99 = vsyncpa [#allocation3], 1

</llo_original>
